<compile_context>
chip_gen: v7x
topology: tpu7x:2x2x1
jax: 0.10.0
libtpu: 0.0.40
codegen_flags: <defaults>
</compile_context>

<pallas_src>
import math

import jax
import jax.numpy as jnp
from jax.experimental import pallas as pl
from jax.experimental.pallas import tpu as pltpu


def net_kernel(adj_ref, x_ref, w1_ref, b1_ref, w2fc_ref, bfold_ref, pa_ref,
               out_ref, acc_h_ref, acc_logits_ref):
    i = pl.program_id(0)          # node-row block of A_hat / hidden state
    k = pl.program_id(1)          # node-column block of A_hat (reduction)
    ni = pl.num_programs(0)
    nk = pl.num_programs(1)

    @pl.when((i == 0) & (k == 0))
    def _():
        acc_logits_ref[...] = jnp.zeros_like(acc_logits_ref)

    @pl.when(k == 0)
    def _():
        acc_h_ref[...] = jnp.zeros_like(acc_h_ref)

    # --- GCNConv1 partial sum over column block k ---------------------------
    #   acc_h[rows_i] += A_hat[rows_i, cols_k] @ (X[cols_k] @ W1)
    # bf16 MXU operands, f32 accumulation.
    xw1 = jnp.dot(x_ref[...], w1_ref[...],
                  preferred_element_type=jnp.float32)                    # [tk, hid] f32
    acc_h_ref[...] += jnp.dot(adj_ref[...], xw1.astype(jnp.bfloat16),
                              preferred_element_type=jnp.float32)        # [tm, hid]

    @pl.when(k == nk - 1)
    def _():
        # bias + ReLU (Dropout p=0.0 is identity).  The post-ReLU tail
        # (GCNConv2 + scatter_mean + fc) is linear and was folded in the
        # wrapper into W2fc = W2@Wfc, PA = pool@A_hat, b_fold = b2@Wfc + bfc.
        h = jnp.maximum(acc_h_ref[...] + b1_ref[...], 0.0)               # [tm, hid] f32
        t = jnp.dot(h.astype(jnp.bfloat16), w2fc_ref[...],
                    preferred_element_type=jnp.float32)                  # [tm, 4]
        acc_logits_ref[...] += jnp.dot(pa_ref[...], t.astype(jnp.bfloat16),
                                       preferred_element_type=jnp.float32)

    @pl.when((i == ni - 1) & (k == nk - 1))
    def _():
        # fc bias + log_softmax(dim=1), f32 epilogue.
        logits = acc_logits_ref[...] + bfold_ref[...]                    # [G, 4]
        m = jnp.max(logits, axis=1, keepdims=True)
        z = logits - m
        lse = jnp.log(jnp.sum(jnp.exp(z), axis=1, keepdims=True))
        out_ref[...] = z - lse


def run_net(adj_norm, x, w1, b1, w2, b2, pool, wfc, bfc, *, tm=256, tk=512):
    n = adj_norm.shape[0]
    g = pool.shape[0]
    c = wfc.shape[1]
    f0 = x.shape[1]
    hid = w1.shape[1]

    # --- algebraic fold of the (linear) post-ReLU tail (exact) --------------
    # pool rows sum to 1 (mean), so pool @ (broadcast b2) == b2, hence b_fold.
    pa = pool @ adj_norm                      # [G, N]
    w2fc = w2 @ wfc                           # [hid, C]
    b_fold = b2 @ wfc + bfc                   # [1, C]

    # --- tile selection & zero-padding ---------------------------------------
    # Small graphs: fully-resident single grid step (block == full array, so
    # the (8,128) divisibility rule is satisfied trivially).  Large graphs:
    # pad N to a tile multiple; padded adjacency rows/cols, X rows and PA
    # columns are all-zero, so padded contributions vanish exactly.
    if n <= max(tm, tk):
        tm_e = tk_e = n
        n_pad = n
    else:
        tm_e, tk_e = tm, tk
        lcm = math.lcm(tm_e, tk_e)
        n_pad = -(-n // lcm) * lcm
        if n_pad != n:
            adj_norm = jnp.pad(adj_norm, ((0, n_pad - n), (0, n_pad - n)))
            x = jnp.pad(x, ((0, n_pad - n), (0, 0)))
            pa = jnp.pad(pa, ((0, 0), (0, n_pad - n)))
    gi, gk = n_pad // tm_e, n_pad // tk_e

    # --- bf16 MXU operands (accumulation stays f32 in-kernel) ---------------
    bf = jnp.bfloat16
    adj_b = adj_norm.astype(bf)
    x_b = x.astype(bf)
    w1_b = w1.astype(bf)
    w2fc_b = w2fc.astype(bf)
    pa_b = pa.astype(bf)
    b1_f = b1.astype(jnp.float32)
    bfold_f = b_fold.astype(jnp.float32)

    in_specs = [
        pl.BlockSpec((tm_e, tk_e), lambda i, k: (i, k)),   # A_hat tile
        pl.BlockSpec((tk_e, f0), lambda i, k: (k, 0)),     # X rows (cols of A_hat)
        pl.BlockSpec((f0, hid), lambda i, k: (0, 0)),      # W1
        pl.BlockSpec((1, hid), lambda i, k: (0, 0)),       # b1 (f32)
        pl.BlockSpec((hid, c), lambda i, k: (0, 0)),       # W2 @ Wfc
        pl.BlockSpec((1, c), lambda i, k: (0, 0)),         # folded bias (f32)
        pl.BlockSpec((g, tm_e), lambda i, k: (0, i)),      # pool @ A_hat columns
    ]
    out_spec = pl.BlockSpec((g, c), lambda i, k: (0, 0))

    return pl.pallas_call(
        net_kernel,
        out_shape=jax.ShapeDtypeStruct((g, c), jnp.float32),
        grid=(gi, gk),                                     # reduction axis last
        in_specs=in_specs,
        out_specs=out_spec,
        scratch_shapes=[
            pltpu.VMEM((tm_e, hid), jnp.float32),          # per-row-block hidden acc
            pltpu.VMEM((g, c), jnp.float32),               # logits accumulator
        ],
        compiler_params=pltpu.CompilerParams(
            dimension_semantics=("arbitrary", "arbitrary"),
            vmem_limit_bytes=48 * 1024 * 1024,
        ),
    )(adj_b, x_b, w1_b, b1_f, w2fc_b, bfold_f, pa_b)


def build_normalized_adjacency(edge_index, num_nodes):
    """Dense A_hat = D^-1/2 (A + I) D^-1/2, A[dst, src] += 1 (PyG message flow;
    duplicate edges scatter-add, matching gcn_norm)."""
    src = edge_index[0]
    dst = edge_index[1]
    a = jnp.zeros((num_nodes, num_nodes), dtype=jnp.float32)
    a = a.at[dst, src].add(1.0)
    a = a + jnp.eye(num_nodes, dtype=jnp.float32)          # self-loops
    deg = jnp.sum(a, axis=1)
    dinv = jnp.where(deg > 0, 1.0 / jnp.sqrt(deg), 0.0)
    return dinv[:, None] * a * dinv[None, :]


def build_pool_matrix(batch, num_graphs):
    """P[g, n] = 1[batch[n] == g] / count[g]  (scatter_mean as matmul)."""
    onehot = (batch[None, :] == jnp.arange(num_graphs)[:, None]).astype(jnp.float32)
    counts = jnp.maximum(jnp.sum(onehot, axis=1, keepdims=True), 1.0)
    return onehot / counts


def _ring_edge_index(num_graphs, nodes_per_graph):
    """Bidirectional ring per graph (deterministic)."""
    edges = []
    for gidx in range(num_graphs):
        base = gidx * nodes_per_graph
        for i in range(nodes_per_graph):
            a_n = base + i
            b_n = base + (i + 1) % nodes_per_graph
            edges.append((a_n, b_n))
            edges.append((b_n, a_n))
    return jnp.array(edges, dtype=jnp.int32).T             # [2, E]


def _reference(adj_norm, x, w1, b1, w2, b2, pool, wfc, bfc):
    """Pure-JAX f32 reference of the ORIGINAL (unfolded) forward pass."""
    h = jnp.maximum(adj_norm @ (x @ w1) + b1, 0.0)
    h = adj_norm @ (h @ w2) + b2
    p = pool @ h
    return jax.nn.log_softmax(p @ wfc + bfc, axis=1)


if __name__ == "__main__":
    # Model hyper-parameters consistent with the module.
    n_total_features = 8
    n_latent = 16                 # conv1 out = 2 * n_latent = 32
    out_feats = 16
    n_classes = 4
    hid = 2 * n_latent

    key = jax.random.PRNGKey(0)
    k_x, k_w1, k_b1, k_w2, k_b2, k_wfc, k_bfc, k_x2 = jax.random.split(key, 8)

    # Deterministic synthetic parameters (shared by both self-checks).
    w1 = 0.1 * jax.random.normal(k_w1, (n_total_features, hid), dtype=jnp.float32)
    b1 = 0.1 * jax.random.normal(k_b1, (1, hid), dtype=jnp.float32)
    w2 = 0.1 * jax.random.normal(k_w2, (hid, out_feats), dtype=jnp.float32)
    b2 = 0.1 * jax.random.normal(k_b2, (1, out_feats), dtype=jnp.float32)
    wfc = 0.1 * jax.random.normal(k_wfc, (out_feats, n_classes), dtype=jnp.float32)
    bfc = 0.1 * jax.random.normal(k_bfc, (1, n_classes), dtype=jnp.float32)

    # ---- check 1: toy shape (fully-resident single grid step) --------------
    num_graphs, nodes_per_graph = 2, 8
    num_nodes = num_graphs * nodes_per_graph               # 16
    x = jax.random.normal(k_x, (num_nodes, n_total_features), dtype=jnp.float32)
    edge_index = _ring_edge_index(num_graphs, nodes_per_graph)
    batch = jnp.repeat(jnp.arange(num_graphs, dtype=jnp.int32), nodes_per_graph)

    adj_norm = build_normalized_adjacency(edge_index, num_nodes)
    pool = build_pool_matrix(batch, num_graphs)

    out = run_net(adj_norm, x, w1, b1, w2, b2, pool, wfc, bfc)
    out = jax.block_until_ready(out)
    ref = _reference(adj_norm, x, w1, b1, w2, b2, pool, wfc, bfc)
    assert jnp.allclose(out, ref, atol=2e-2), (out, ref)   # bf16 MXU operands

    # ---- check 2: tiled + zero-padded path (N=250 not tile-divisible) ------
    num_graphs2, nodes_per_graph2 = 5, 50
    num_nodes2 = num_graphs2 * nodes_per_graph2            # 250 -> padded to 256
    x2 = jax.random.normal(k_x2, (num_nodes2, n_total_features), dtype=jnp.float32)
    edge_index2 = _ring_edge_index(num_graphs2, nodes_per_graph2)
    batch2 = jnp.repeat(jnp.arange(num_graphs2, dtype=jnp.int32), nodes_per_graph2)

    adj_norm2 = build_normalized_adjacency(edge_index2, num_nodes2)
    pool2 = build_pool_matrix(batch2, num_graphs2)

    out2 = run_net(adj_norm2, x2, w1, b1, w2, b2, pool2, wfc, bfc, tm=128, tk=128)
    out2 = jax.block_until_ready(out2)
    ref2 = _reference(adj_norm2, x2, w1, b1, w2, b2, pool2, wfc, bfc)
    assert jnp.allclose(out2, ref2, atol=3e-2), (out2, ref2)

    print("KERNEL_OK")
</pallas_src>

<mosaic_0001>
module attributes {stable_mosaic.version = 11 : i64} {
  func.func @net_kernel(%arg0: i32, %arg1: i32, %arg2: memref<16x16xbf16, #tpu.memory_space<vmem>>, %arg3: memref<16x8xbf16, #tpu.memory_space<vmem>>, %arg4: memref<8x32xbf16, #tpu.memory_space<vmem>>, %arg5: memref<1x32xf32, #tpu.memory_space<vmem>>, %arg6: memref<32x4xbf16, #tpu.memory_space<vmem>>, %arg7: memref<1x4xf32, #tpu.memory_space<vmem>>, %arg8: memref<2x16xbf16, #tpu.memory_space<vmem>>, %arg9: memref<2x4xf32, #tpu.memory_space<vmem>>, %arg10: memref<16x32xf32, #tpu.memory_space<vmem>>, %arg11: memref<2x4xf32, #tpu.memory_space<vmem>>) attributes {dimension_semantics = [#tpu.dimension_semantics<arbitrary>, #tpu.dimension_semantics<arbitrary>], iteration_bounds = array<i64: 1, 1>, scalar_prefetch = 0 : i64, scratch_operands = 2 : i64, tpu.core_type = #tpu.core_type<tc>, window_params = [{transform_indices = @transform_0, window_bounds = array<i64: 16, 16>}, {transform_indices = @transform_1, window_bounds = array<i64: 16, 8>}, {pipeline_mode = #tpu.pipeline_mode<synchronous>, transform_indices = @transform_2, window_bounds = array<i64: 8, 32>}, {pipeline_mode = #tpu.pipeline_mode<synchronous>, transform_indices = @transform_3, window_bounds = array<i64: 1, 32>}, {pipeline_mode = #tpu.pipeline_mode<synchronous>, transform_indices = @transform_4, window_bounds = array<i64: 32, 4>}, {pipeline_mode = #tpu.pipeline_mode<synchronous>, transform_indices = @transform_5, window_bounds = array<i64: 1, 4>}, {transform_indices = @transform_6, window_bounds = array<i64: 2, 16>}, {pipeline_mode = #tpu.pipeline_mode<synchronous>, transform_indices = @transform_7, window_bounds = array<i64: 2, 4>}]} {
    %c0_i32 = arith.constant 0 : i32
    %0 = arith.cmpi eq, %arg0, %c0_i32 : i32
    %c0_i32_0 = arith.constant 0 : i32
    %1 = arith.cmpi eq, %arg1, %c0_i32_0 : i32
    %2 = arith.andi %0, %1 : i1
    %3 = arith.extui %2 : i1 to i32
    %c0_i32_1 = arith.constant 0 : i32
    %4 = arith.cmpi ne, %3, %c0_i32_1 : i32
    scf.if %4 {
      %cst_19 = arith.constant 0.000000e+00 : f32
      %25 = vector.broadcast %cst_19 : f32 to vector<2x4xf32>
      %c0_20 = arith.constant 0 : index
      %c0_21 = arith.constant 0 : index
      %26 = vector.load %arg11[%c0_20, %c0_21] : memref<2x4xf32, #tpu.memory_space<vmem>>, vector<2x4xf32>
      tpu.vector_store %arg11[%c0_20, %c0_21], %25 {strides = array<i32>} : memref<2x4xf32, #tpu.memory_space<vmem>>, vector<2x4xf32>,
    } else {
    }
    %c0_i32_2 = arith.constant 0 : i32
    %5 = arith.cmpi eq, %arg1, %c0_i32_2 : i32
    %6 = arith.extui %5 : i1 to i32
    %c0_i32_3 = arith.constant 0 : i32
    %7 = arith.cmpi ne, %6, %c0_i32_3 : i32
    scf.if %7 {
      %cst_19 = arith.constant 0.000000e+00 : f32
      %25 = vector.broadcast %cst_19 : f32 to vector<16x32xf32>
      %c0_20 = arith.constant 0 : index
      %c0_21 = arith.constant 0 : index
      %26 = vector.load %arg10[%c0_20, %c0_21] : memref<16x32xf32, #tpu.memory_space<vmem>>, vector<16x32xf32>
      tpu.vector_store %arg10[%c0_20, %c0_21], %25 {strides = array<i32>} : memref<16x32xf32, #tpu.memory_space<vmem>>, vector<16x32xf32>,
    } else {
    }
    %c0 = arith.constant 0 : index
    %c0_4 = arith.constant 0 : index
    %8 = vector.load %arg3[%c0, %c0_4] : memref<16x8xbf16, #tpu.memory_space<vmem>>, vector<16x8xbf16>
    %c0_5 = arith.constant 0 : index
    %c0_6 = arith.constant 0 : index
    %9 = vector.load %arg4[%c0_5, %c0_6] : memref<8x32xbf16, #tpu.memory_space<vmem>>, vector<8x32xbf16>
    %cst = arith.constant dense<0.000000e+00> : vector<16x32xf32>
    %10 = tpu.matmul %8, %9, %cst {dimension_numbers = #tpu.dot_dimension_numbers<[1], [0], [0], [1], [0, 0, 1, 1], [], []>} : vector<16x8xbf16>, vector<8x32xbf16>, vector<16x32xf32> -> vector<16x32xf32>
    %c0_7 = arith.constant 0 : index
    %c0_8 = arith.constant 0 : index
    %11 = vector.load %arg10[%c0_7, %c0_8] : memref<16x32xf32, #tpu.memory_space<vmem>>, vector<16x32xf32>
    %c0_9 = arith.constant 0 : index
    %c0_10 = arith.constant 0 : index
    %12 = vector.load %arg2[%c0_9, %c0_10] : memref<16x16xbf16, #tpu.memory_space<vmem>>, vector<16x16xbf16>
    %13 = arith.truncf %10 : vector<16x32xf32> to vector<16x32xbf16>
    %cst_11 = arith.constant dense<0.000000e+00> : vector<16x32xf32>
    %14 = tpu.matmul %12, %13, %cst_11 {dimension_numbers = #tpu.dot_dimension_numbers<[1], [0], [0], [1], [0, 0, 1, 1], [], []>} : vector<16x16xbf16>, vector<16x32xbf16>, vector<16x32xf32> -> vector<16x32xf32>
    %15 = arith.addf %11, %14 : vector<16x32xf32>
    %c0_12 = arith.constant 0 : index
    %c0_13 = arith.constant 0 : index
    %16 = vector.load %arg10[%c0_12, %c0_13] : memref<16x32xf32, #tpu.memory_space<vmem>>, vector<16x32xf32>
    tpu.vector_store %arg10[%c0_12, %c0_13], %15 {strides = array<i32>} : memref<16x32xf32, #tpu.memory_space<vmem>>, vector<16x32xf32>,
    %c0_i32_14 = arith.constant 0 : i32
    %17 = arith.cmpi eq, %arg1, %c0_i32_14 : i32
    %18 = arith.extui %17 : i1 to i32
    %c0_i32_15 = arith.constant 0 : i32
    %19 = arith.cmpi ne, %18, %c0_i32_15 : i32
    scf.if %19 {
      %c0_19 = arith.constant 0 : index
      %c0_20 = arith.constant 0 : index
      %25 = vector.load %arg10[%c0_19, %c0_20] : memref<16x32xf32, #tpu.memory_space<vmem>>, vector<16x32xf32>
      %c0_21 = arith.constant 0 : index
      %c0_22 = arith.constant 0 : index
      %26 = vector.load %arg5[%c0_21, %c0_22] : memref<1x32xf32, #tpu.memory_space<vmem>>, vector<1x32xf32>
      %27 = vector.broadcast %26 : vector<1x32xf32> to vector<16x32xf32>
      %28 = arith.addf %25, %27 : vector<16x32xf32>
      %cst_23 = arith.constant 0.000000e+00 : f32
      %29 = vector.broadcast %cst_23 : f32 to vector<16x32xf32>
      %30 = arith.maximumf %28, %29 : vector<16x32xf32>
      %31 = arith.truncf %30 : vector<16x32xf32> to vector<16x32xbf16>
      %c0_24 = arith.constant 0 : index
      %c0_25 = arith.constant 0 : index
      %32 = vector.load %arg6[%c0_24, %c0_25] : memref<32x4xbf16, #tpu.memory_space<vmem>>, vector<32x4xbf16>
      %cst_26 = arith.constant dense<0.000000e+00> : vector<16x4xf32>
      %33 = tpu.matmul %31, %32, %cst_26 {dimension_numbers = #tpu.dot_dimension_numbers<[1], [0], [0], [1], [0, 0, 1, 1], [], []>} : vector<16x32xbf16>, vector<32x4xbf16>, vector<16x4xf32> -> vector<16x4xf32>
      %c0_27 = arith.constant 0 : index
      %c0_28 = arith.constant 0 : index
      %34 = vector.load %arg11[%c0_27, %c0_28] : memref<2x4xf32, #tpu.memory_space<vmem>>, vector<2x4xf32>
      %c0_29 = arith.constant 0 : index
      %c0_30 = arith.constant 0 : index
      %35 = vector.load %arg8[%c0_29, %c0_30] : memref<2x16xbf16, #tpu.memory_space<vmem>>, vector<2x16xbf16>
      %36 = arith.truncf %33 : vector<16x4xf32> to vector<16x4xbf16>
      %cst_31 = arith.constant dense<0.000000e+00> : vector<2x4xf32>
      %37 = tpu.matmul %35, %36, %cst_31 {dimension_numbers = #tpu.dot_dimension_numbers<[1], [0], [0], [1], [0, 0, 1, 1], [], []>} : vector<2x16xbf16>, vector<16x4xbf16>, vector<2x4xf32> -> vector<2x4xf32>
      %38 = arith.addf %34, %37 : vector<2x4xf32>
      %c0_32 = arith.constant 0 : index
      %c0_33 = arith.constant 0 : index
      %39 = vector.load %arg11[%c0_32, %c0_33] : memref<2x4xf32, #tpu.memory_space<vmem>>, vector<2x4xf32>
      tpu.vector_store %arg11[%c0_32, %c0_33], %38 {strides = array<i32>} : memref<2x4xf32, #tpu.memory_space<vmem>>, vector<2x4xf32>,
    } else {
    }
    %c0_i32_16 = arith.constant 0 : i32
    %20 = arith.cmpi eq, %arg0, %c0_i32_16 : i32
    %c0_i32_17 = arith.constant 0 : i32
    %21 = arith.cmpi eq, %arg1, %c0_i32_17 : i32
    %22 = arith.andi %20, %21 : i1
    %23 = arith.extui %22 : i1 to i32
    %c0_i32_18 = arith.constant 0 : i32
    %24 = arith.cmpi ne, %23, %c0_i32_18 : i32
    scf.if %24 {
      %c0_19 = arith.constant 0 : index
      %c0_20 = arith.constant 0 : index
      %25 = vector.load %arg11[%c0_19, %c0_20] : memref<2x4xf32, #tpu.memory_space<vmem>>, vector<2x4xf32>
      %c0_21 = arith.constant 0 : index
      %c0_22 = arith.constant 0 : index
      %26 = vector.load %arg7[%c0_21, %c0_22] : memref<1x4xf32, #tpu.memory_space<vmem>>, vector<1x4xf32>
      %27 = vector.broadcast %26 : vector<1x4xf32> to vector<2x4xf32>
      %28 = arith.addf %25, %27 : vector<2x4xf32>
      %cst_23 = arith.constant dense<0xFF800000> : vector<2xf32>
      %29 = vector.multi_reduction <maximumf>, %28, %cst_23 [1] : vector<2x4xf32> to vector<2xf32>
      %30 = vector.shape_cast %29 : vector<2xf32> to vector<2x1xf32>
      %31 = vector.broadcast %30 : vector<2x1xf32> to vector<2x4xf32>
      %32 = arith.subf %28, %31 : vector<2x4xf32>
      %33 = math.exp %32 : vector<2x4xf32>
      %cst_24 = arith.constant dense<0.000000e+00> : vector<2xf32>
      %34 = vector.multi_reduction <add>, %33, %cst_24 [1] : vector<2x4xf32> to vector<2xf32>
      %35 = vector.shape_cast %34 : vector<2xf32> to vector<2x1xf32>
      %36 = math.log %35 : vector<2x1xf32>
      %37 = vector.broadcast %36 : vector<2x1xf32> to vector<2x4xf32>
      %38 = arith.subf %32, %37 : vector<2x4xf32>
      %c0_25 = arith.constant 0 : index
      %c0_26 = arith.constant 0 : index
      %39 = vector.load %arg9[%c0_25, %c0_26] : memref<2x4xf32, #tpu.memory_space<vmem>>, vector<2x4xf32>
      tpu.vector_store %arg9[%c0_25, %c0_26], %38 {strides = array<i32>} : memref<2x4xf32, #tpu.memory_space<vmem>>, vector<2x4xf32>,
    } else {
    }
    return
  }
  func.func @transform_0(%arg0: i32, %arg1: i32) -> (i32, i32) {
    %c0_i32 = arith.constant 0 : i32
    return %arg0, %arg1 : i32, i32
  }
  func.func @transform_1(%arg0: i32, %arg1: i32) -> (i32, i32) {
    %c0_i32 = arith.constant 0 : i32
    %c0_i32_0 = arith.constant 0 : i32
    return %arg1, %c0_i32 : i32, i32
  }
  func.func @transform_2(%arg0: i32, %arg1: i32) -> (i32, i32) {
    %c0_i32 = arith.constant 0 : i32
    %c0_i32_0 = arith.constant 0 : i32
    %c0_i32_1 = arith.constant 0 : i32
    return %c0_i32, %c0_i32_0 : i32, i32
  }
  func.func @transform_3(%arg0: i32, %arg1: i32) -> (i32, i32) {
    %c0_i32 = arith.constant 0 : i32
    %c0_i32_0 = arith.constant 0 : i32
    %c0_i32_1 = arith.constant 0 : i32
    return %c0_i32, %c0_i32_0 : i32, i32
  }
  func.func @transform_4(%arg0: i32, %arg1: i32) -> (i32, i32) {
    %c0_i32 = arith.constant 0 : i32
    %c0_i32_0 = arith.constant 0 : i32
    %c0_i32_1 = arith.constant 0 : i32
    return %c0_i32, %c0_i32_0 : i32, i32
  }
  func.func @transform_5(%arg0: i32, %arg1: i32) -> (i32, i32) {
    %c0_i32 = arith.constant 0 : i32
    %c0_i32_0 = arith.constant 0 : i32
    %c0_i32_1 = arith.constant 0 : i32
    return %c0_i32, %c0_i32_0 : i32, i32
  }
  func.func @transform_6(%arg0: i32, %arg1: i32) -> (i32, i32) {
    %c0_i32 = arith.constant 0 : i32
    %c0_i32_0 = arith.constant 0 : i32
    return %c0_i32, %arg0 : i32, i32
  }
  func.func @transform_7(%arg0: i32, %arg1: i32) -> (i32, i32) {
    %c0_i32 = arith.constant 0 : i32
    %c0_i32_0 = arith.constant 0 : i32
    %c0_i32_1 = arith.constant 0 : i32
    return %c0_i32, %c0_i32_0 : i32, i32
  }
}

</mosaic_0001>

<llo_original>
// kernel: tpu_custom_call.1
$region0: #{tpu_custom_call.1}
  #allocation0 [shape = 'u32[]', space=smem, size = 0x4, offset = 0x4, fixed_abs, tag = 'smem constant byte address 0x4 - core index']
  #allocation1 [shape = 'u32[144,128]{1,0:T(1,128)}', space=vmem, size = 0x12000, scoped, tag = 'internal scratch']
  #allocation2 [shape = 'f32[16,32]{1,0:T(8,128)}', space=vmem, size = 0x2000, scoped, tag = 'scratch operand']
  #allocation3 [shape = 'f32[2,4]{1,0:T(2,128)}', space=vmem, size = 0x400, scoped, tag = 'scratch operand']
  %s0 = inlined_call_operand.vmem [shape: bf16[16,16], index: 0, kind: input, shape index: {}]
  %s1 = inlined_call_operand.vmem [shape: bf16[16,8], index: 1, kind: input, shape index: {}]
  %s2 = inlined_call_operand.vmem [shape: bf16[8,32], index: 2, kind: input, shape index: {}]
  %s3 = inlined_call_operand.vmem [shape: f32[1,32], index: 3, kind: input, shape index: {}]
  %s4 = inlined_call_operand.vmem [shape: bf16[32,4], index: 4, kind: input, shape index: {}]
  %s5 = inlined_call_operand.vmem [shape: f32[1,4], index: 5, kind: input, shape index: {}]
  %s6 = inlined_call_operand.vmem [shape: bf16[2,16], index: 6, kind: input, shape index: {}]
  %s7 = inlined_call_operand.hbm [shape: f32[2,4], index: 7, kind: output, shape index: {}]
  %s8 = sld [smem:[#allocation0]]
  $region54: #{tpu_custom_call.1} parent=0
    _
  %s10 = ssub.s32 1, %s8
  %s11 = scalar_select 0, %s10, %s8
  $region1: #{tpu_custom_call.1} parent=0
    #allocation4 [shape = 'u8[1024]{0}', space=vmem, size = 0x400, scoped, tag = 'output window, operand 0, single buffered']
    #allocation5 [shape = 's32[1]{0}', space=sflag, size = 0x4, scoped, tag = 'scoped memory for tpu_custom_call.1']
    %12 = vsyncpa [#allocation5], 0
    // Predicated region
    $region2: #{tpu_custom_call.1} parent=1 // pred_check
      _
    $region3: #{tpu_custom_call.1} parent=1 // pred_check_branch
      %14 = sbr.rel (0) target = $region5
    $region4: #{tpu_custom_call.1} parent=1 // pred_region
      _
    $region5: #{tpu_custom_call.1} parent=1 // pred_fallthru
      _
    // Predicated region
    $region6: #{tpu_custom_call.1} parent=1 // pred_check
      _
    $region7: #{tpu_custom_call.1} parent=1 // pred_check_branch
      %16 = sbr.rel (0) target = $region9
    $region8: #{tpu_custom_call.1} parent=1 // pred_region
      _
    $region9: #{tpu_custom_call.1} parent=1 // pred_fallthru
      _
    // Predicated region
    $region10: #{tpu_custom_call.1} parent=1 // pred_check
      _
    $region11: #{tpu_custom_call.1} parent=1 // pred_check_branch
      %18 = sbr.rel (0) target = $region13
    $region12: #{tpu_custom_call.1} parent=1 // pred_region
      _
    $region13: #{tpu_custom_call.1} parent=1 // pred_fallthru
      _
    // Predicated region
    $region14: #{tpu_custom_call.1} parent=1 // pred_check
      _
    $region15: #{tpu_custom_call.1} parent=1 // pred_check_branch
      %20 = sbr.rel (0) target = $region17
    $region16: #{tpu_custom_call.1} parent=1 // pred_region
      _
    $region17: #{tpu_custom_call.1} parent=1 // pred_fallthru
      _
    // Predicated region
    $region18: #{tpu_custom_call.1} parent=1 // pred_check
      _
    $region19: #{tpu_custom_call.1} parent=1 // pred_check_branch
      %22 = sbr.rel (0) target = $region21
    $region20: #{tpu_custom_call.1} parent=1 // pred_region
      _
    $region21: #{tpu_custom_call.1} parent=1 // pred_fallthru
      _
    // Predicated region
    $region22: #{tpu_custom_call.1} parent=1 // pred_check
      _
    $region23: #{tpu_custom_call.1} parent=1 // pred_check_branch
      %24 = sbr.rel (0) target = $region25
    $region24: #{tpu_custom_call.1} parent=1 // pred_region
      _
    $region25: #{tpu_custom_call.1} parent=1 // pred_fallthru
      _
    // Predicated region
    $region26: #{tpu_custom_call.1} parent=1 // pred_check
      _
    $region27: #{tpu_custom_call.1} parent=1 // pred_check_branch
      %26 = sbr.rel (0) target = $region29
    $region28: #{tpu_custom_call.1} parent=1 // pred_region
      _
    $region29: #{tpu_custom_call.1} parent=1 // pred_fallthru
      _
    %p28 = scmp.eq.s32.totalorder 0, 0
    %p29 = scmp.eq.s32.totalorder 0, 0
    %p30 = pnand %p28, %p29
    %p31 = pneg %p30
    // Predicated region
    $region30: #{tpu_custom_call.1} parent=1 // pred_check
      _
    $region31: #{tpu_custom_call.1} parent=1 // pred_check_branch
      %33 = sbr.rel (%p30) target = $region33
    $region32: #{tpu_custom_call.1} parent=1 // pred_region
      %vm34 = vcmask 25600
      %35 = vst.msk [vmem:[#allocation3] sm:$0x3] %vm34, 0.0
    $region33: #{tpu_custom_call.1} parent=1 // pred_fallthru
      _
    // Predicated region
    $region34: #{tpu_custom_call.1} parent=1 // pred_check
      %p36 = pneg %p29
    $region35: #{tpu_custom_call.1} parent=1 // pred_check_branch
      %38 = sbr.rel (%p36) target = $region37
    $region36: #{tpu_custom_call.1} parent=1 // pred_region
      %vm39 = vcmask 261120
      %40 = vst.msk [vmem:[#allocation2] sm:$0xff] %vm39, 0.0
      %41 = vst.msk [vmem:[#allocation2 + $0x8] sm:$0xff] %vm39, 0.0
    $region37: #{tpu_custom_call.1} parent=1 // pred_fallthru
      _
    %v42 = vld [vmem:[%s1] sm:$0xf]
    %v43 = vld [vmem:[%s1 + $0x4] sm:$0xf]
    %v44 = vld [vmem:[%s2] sm:$0xf]
    %v47 = vunpack.c.l.b16 %v42
    %v48 = vunpack.c.l.b16 %v43
    %v49 = vpack.c.b16 %v48, %v47
    %vm50 = vcmask 64512
    %v52 = vsel %vm50, %v49, 0
    %vm54 = vcmask 1043456
    %v56 = vsel %vm54, %v44, 0
    %58 = vmatprep.subr.bf16.mxu0 0
    %59 = vmatpush1.bf16.msra.mxu0 %v56
    %60 = vmatprep.subr.bf16.mxu0 0
    %61 = vmatpush1.bf16.msra.mxu0 0
    %62 = vmatprep.subr.bf16.mxu0 0
    %63 = vmatpush1.bf16.msra.mxu0 0
    %64 = vmatprep.subr.bf16.mxu0 0
    %65 = vmatpush1.bf16.msra.mxu0 0
    %66 = vmatprep.subr.bf16.mxu0 0
    %67 = vmatpush1.bf16.msra.mxu0 0
    %68 = vmatprep.subr.bf16.mxu0 0
    %69 = vmatpush1.bf16.msra.mxu0 0
    %70 = vmatprep.subr.bf16.mxu0 0
    %71 = vmatpush1.bf16.msra.mxu0 0
    %72 = vmatprep.subr.bf16.mxu0 0
    %73 = vmatpush1.bf16.msra.mxu0 0
    %74 = vmatprep.subr.bf16.mxu0 0
    %75 = vmatpush1.bf16.msra.mxu0 0
    %76 = vmatprep.subr.bf16.mxu0 0
    %77 = vmatpush1.bf16.msra.mxu0 0
    %78 = vmatprep.subr.bf16.mxu0 0
    %79 = vmatpush1.bf16.msra.mxu0 0
    %80 = vmatprep.subr.bf16.mxu0 0
    %81 = vmatpush1.bf16.msra.mxu0 0
    %82 = vmatprep.subr.bf16.mxu0 0
    %83 = vmatpush1.bf16.msra.mxu0 0
    %84 = vmatprep.subr.bf16.mxu0 0
    %85 = vmatpush1.bf16.msra.mxu0 0
    %86 = vmatprep.subr.bf16.mxu0 0
    %87 = vmatpush1.bf16.msra.mxu0 0
    %88 = vmatprep.subr.bf16.mxu0 0
    %89 = vmatpush1.bf16.msra.mxu0 0
    %90 = vmatprep.mubr.bf16.mxu0 0
    %91 = vmatmul.mubr.bf16.gmra.mrb[0].mxu0 %v52
    %v92 = vpop.f32.mrb[0].mxu0
    %v93 = vadd.f32 0.0, %v92
    %v94 = vpop.f32.mrb[0].mxu0
    %v95 = vpop.f32.mrb[0].mxu0
    %v96 = vadd.f32 0.0, %v95
    %v97 = vpop.f32.mrb[0].mxu0
    %98 = vdwg.mxu0
    %v99 = vld [vmem:[#allocation2] sm:$0xff]
    %v100 = vld [vmem:[#allocation2 + $0x8] sm:$0xff]
    %v101 = vld [vmem:[%s0] sm:$0xf]
    %v102 = vld [vmem:[%s0 + $0x4] sm:$0xf]
    %v103 = vpack.c.bf16 %v96, %v93
    %v106 = vunpack.c.l.b16 %v101
    %v107 = vunpack.c.l.b16 %v102
    %v108 = vpack.c.b16 %v107, %v106
    %vm109 = vcmask 130048
    %v111 = vsel %vm109, %v108, 0
    %113 = vmatprep.subr.bf16.mxu0 0
    %114 = vmatpush1.bf16.msra.mxu0 %v103
    %115 = vmatprep.subr.bf16.mxu0 0
    %116 = vmatpush1.bf16.msra.mxu0 0
    %117 = vmatprep.subr.bf16.mxu0 0
    %118 = vmatpush1.bf16.msra.mxu0 0
    %119 = vmatprep.subr.bf16.mxu0 0
    %120 = vmatpush1.bf16.msra.mxu0 0
    %121 = vmatprep.subr.bf16.mxu0 0
    %122 = vmatpush1.bf16.msra.mxu0 0
    %123 = vmatprep.subr.bf16.mxu0 0
    %124 = vmatpush1.bf16.msra.mxu0 0
    %125 = vmatprep.subr.bf16.mxu0 0
    %126 = vmatpush1.bf16.msra.mxu0 0
    %127 = vmatprep.subr.bf16.mxu0 0
    %128 = vmatpush1.bf16.msra.mxu0 0
    %129 = vmatprep.subr.bf16.mxu0 0
    %130 = vmatpush1.bf16.msra.mxu0 0
    %131 = vmatprep.subr.bf16.mxu0 0
    %132 = vmatpush1.bf16.msra.mxu0 0
    %133 = vmatprep.subr.bf16.mxu0 0
    %134 = vmatpush1.bf16.msra.mxu0 0
    %135 = vmatprep.subr.bf16.mxu0 0
    %136 = vmatpush1.bf16.msra.mxu0 0
    %137 = vmatprep.subr.bf16.mxu0 0
    %138 = vmatpush1.bf16.msra.mxu0 0
    %139 = vmatprep.subr.bf16.mxu0 0
    %140 = vmatpush1.bf16.msra.mxu0 0
    %141 = vmatprep.subr.bf16.mxu0 0
    %142 = vmatpush1.bf16.msra.mxu0 0
    %143 = vmatprep.subr.bf16.mxu0 0
    %144 = vmatpush1.bf16.msra.mxu0 0
    %145 = vmatprep.mubr.bf16.mxu0 0
    %146 = vmatmul.mubr.bf16.gmra.mrb[0].mxu0 %v111
    %v147 = vpop.f32.mrb[0].mxu0
    %v148 = vadd.f32 0.0, %v147
    %v149 = vpop.f32.mrb[0].mxu0
    %v150 = vpop.f32.mrb[0].mxu0
    %v151 = vadd.f32 0.0, %v150
    %v152 = vpop.f32.mrb[0].mxu0
    %153 = vdwg.mxu0
    %v154 = vadd.f32 %v99, %v148
    %v155 = vadd.f32 %v100, %v151
    %vm156 = vcmask 261120
    %157 = vst.msk [vmem:[#allocation2] sm:$0xff] %vm156, %v154
    %158 = vst.msk [vmem:[#allocation2 + $0x8] sm:$0xff] %vm156, %v155
    // Predicated region
    $region38: #{tpu_custom_call.1} parent=1 // pred_check
      %p159 = pneg %p29
    $region39: #{tpu_custom_call.1} parent=1 // pred_check_branch
      %161 = sbr.rel (%p159) target = $region41
    $region40: #{tpu_custom_call.1} parent=1 // pred_region
      %v162 = vld [vmem:[#allocation2] sm:$0xff]
      %v163 = vld [vmem:[#allocation2 + $0x8] sm:$0xff]
      %v164 = vld [vmem:[%s3] sm:$0x1]
      %v166 = vlaneseq
      %v167 = vshrl.u32 %v166, 7
      %v168 = vsub.s32 0, %v167
      %v169 = vrot.slane %v164, %v168
      %v171 = vadd.f32 %v162, %v169
      %v172 = vadd.f32 %v163, %v169
      %v173 = vmax.f32 %v171, 0.0
      %v174 = vmax.f32 %v172, 0.0
      %v175 = vpack.c.bf16 %v174, %v173
      %v176 = vld [vmem:[%s4] sm:$0xf]
      %v177 = vld [vmem:[%s4 + $0x4] sm:$0xf]
      %v178 = vld [vmem:[%s4 + $0x8] sm:$0xf]
      %v179 = vld [vmem:[%s4 + $0xc] sm:$0xf]
      %v184 = vunpack.c.l.b16 %v176
      %v185 = vunpack.c.l.b16 %v177
      %v186 = vunpack.c.l.b16 %v178
      %v187 = vunpack.c.l.b16 %v179
      %v188 = vpack.c.b16 %v185, %v184
      %v189 = vpack.c.b16 %v187, %v186
      %v193 = vsel %vm156, %v175, 0
      %195 = vmatprep.subr.bf16.mxu0 0
      %196 = vmatpush1.bf16.msra.mxu0 %v188
      %197 = vmatprep.subr.bf16.mxu0 0
      %198 = vmatpush1.bf16.msra.mxu0 %v189
      %199 = vmatprep.subr.bf16.mxu0 0
      %200 = vmatpush1.bf16.msra.mxu0 0
      %201 = vmatprep.subr.bf16.mxu0 0
      %202 = vmatpush1.bf16.msra.mxu0 0
      %203 = vmatprep.subr.bf16.mxu0 0
      %204 = vmatpush1.bf16.msra.mxu0 0
      %205 = vmatprep.subr.bf16.mxu0 0
      %206 = vmatpush1.bf16.msra.mxu0 0
      %207 = vmatprep.subr.bf16.mxu0 0
      %208 = vmatpush1.bf16.msra.mxu0 0
      %209 = vmatprep.subr.bf16.mxu0 0
      %210 = vmatpush1.bf16.msra.mxu0 0
      %211 = vmatprep.subr.bf16.mxu0 0
      %212 = vmatpush1.bf16.msra.mxu0 0
      %213 = vmatprep.subr.bf16.mxu0 0
      %214 = vmatpush1.bf16.msra.mxu0 0
      %215 = vmatprep.subr.bf16.mxu0 0
      %216 = vmatpush1.bf16.msra.mxu0 0
      %217 = vmatprep.subr.bf16.mxu0 0
      %218 = vmatpush1.bf16.msra.mxu0 0
      %219 = vmatprep.subr.bf16.mxu0 0
      %220 = vmatpush1.bf16.msra.mxu0 0
      %221 = vmatprep.subr.bf16.mxu0 0
      %222 = vmatpush1.bf16.msra.mxu0 0
      %223 = vmatprep.subr.bf16.mxu0 0
      %224 = vmatpush1.bf16.msra.mxu0 0
      %225 = vmatprep.subr.bf16.mxu0 0
      %226 = vmatpush1.bf16.msra.mxu0 0
      %227 = vmatprep.mubr.bf16.mxu0 0
      %228 = vmatmul.mubr.bf16.gmra.mrb[0].mxu0 %v193
      %v229 = vpop.f32.mrb[0].mxu0
      %v230 = vadd.f32 0.0, %v229
      %v231 = vpop.f32.mrb[0].mxu0
      %v232 = vpop.f32.mrb[0].mxu0
      %v233 = vadd.f32 0.0, %v232
      %v234 = vpop.f32.mrb[0].mxu0
      %235 = vdwg.mxu0
      %v236 = vld [vmem:[#allocation3] sm:$0x3]
      %v237 = vld [vmem:[%s6] sm:$0x1]
      %v238 = vpack.c.bf16 %v233, %v230
      %v240 = vsel %vm109, %v237, 0
      %242 = vmatprep.subr.bf16.mxu0 0
      %243 = vmatpush1.bf16.msra.mxu0 %v238
      %244 = vmatprep.subr.bf16.mxu0 0
      %245 = vmatpush1.bf16.msra.mxu0 0
      %246 = vmatprep.subr.bf16.mxu0 0
      %247 = vmatpush1.bf16.msra.mxu0 0
      %248 = vmatprep.subr.bf16.mxu0 0
      %249 = vmatpush1.bf16.msra.mxu0 0
      %250 = vmatprep.subr.bf16.mxu0 0
      %251 = vmatpush1.bf16.msra.mxu0 0
      %252 = vmatprep.subr.bf16.mxu0 0
      %253 = vmatpush1.bf16.msra.mxu0 0
      %254 = vmatprep.subr.bf16.mxu0 0
      %255 = vmatpush1.bf16.msra.mxu0 0
      %256 = vmatprep.subr.bf16.mxu0 0
      %257 = vmatpush1.bf16.msra.mxu0 0
      %258 = vmatprep.subr.bf16.mxu0 0
      %259 = vmatpush1.bf16.msra.mxu0 0
      %260 = vmatprep.subr.bf16.mxu0 0
      %261 = vmatpush1.bf16.msra.mxu0 0
      %262 = vmatprep.subr.bf16.mxu0 0
      %263 = vmatpush1.bf16.msra.mxu0 0
      %264 = vmatprep.subr.bf16.mxu0 0
      %265 = vmatpush1.bf16.msra.mxu0 0
      %266 = vmatprep.subr.bf16.mxu0 0
      %267 = vmatpush1.bf16.msra.mxu0 0
      %268 = vmatprep.subr.bf16.mxu0 0
      %269 = vmatpush1.bf16.msra.mxu0 0
      %270 = vmatprep.subr.bf16.mxu0 0
      %271 = vmatpush1.bf16.msra.mxu0 0
      %272 = vmatprep.subr.bf16.mxu0 0
      %273 = vmatpush1.bf16.msra.mxu0 0
      %274 = vmatprep.mubr.bf16.mxu0 0
      %275 = vmatmul.mubr.bf16.gmra.mrb[0].mxu0 %v240
      %v276 = vpop.f32.mrb[0].mxu0
      %v277 = vadd.f32 0.0, %v276
      %v278 = vpop.f32.mrb[0].mxu0
      %v279 = vpop.f32.mrb[0].mxu0
      %v280 = vpop.f32.mrb[0].mxu0
      %281 = vdwg.mxu0
      %v282 = vadd.f32 %v236, %v277
      %vm283 = vcmask 25600
      %284 = vst.msk [vmem:[#allocation3] sm:$0x3] %vm283, %v282
    $region41: #{tpu_custom_call.1} parent=1 // pred_fallthru
      _
    // Predicated region
    $region42: #{tpu_custom_call.1} parent=1 // pred_check
      _
    $region43: #{tpu_custom_call.1} parent=1 // pred_check_branch
      %286 = sbr.rel (%p30) target = $region45
    $region44: #{tpu_custom_call.1} parent=1 // pred_region
      %v287 = vld [vmem:[#allocation3] sm:$0x3]
      %v288 = vld [vmem:[%s5] sm:$0x1]
      %v290 = vlaneseq
      %v291 = vshrl.u32 %v290, 7
      %v292 = vsub.s32 0, %v291
      %v293 = vrot.slane %v288, %v292
      %v295 = vadd.f32 %v287, %v293
      %vm296 = vcmask 25600
      %v297 = vsel %vm296, %v295, -inf
      %298 = vmax.xlane.f32.xlu0 %v297
      %v299 = vpop.xlane.xlu0 %298
      %v300 = vsub.f32 %v295, %v299
      %v301 = vmul.f32 %v300, 1.442695
      %v302 = vpow.pop %v301
      %v303 = vsel %vm296, %v302, 0.0
      %304 = vadd.xlane.f32.xlu0 %v303
      %v305 = vpop.xlane.xlu0 %304
      %v306 = vlog2.pop %v305
      %v307 = vmul.f32 %v306, 0.6931472
      %v308 = vsub.f32 %v300, %v307
      %309 = vst.msk [vmem:[#allocation4] sm:$0x3] %vm296, %v308
    $region45: #{tpu_custom_call.1} parent=1 // pred_fallthru
      _
    // Predicated region
    $region46: #{tpu_custom_call.1} parent=1 // pred_check
      _
    $region47: #{tpu_custom_call.1} parent=1 // pred_check_branch
      %311 = sbr.rel (0) target = $region49
    $region48: #{tpu_custom_call.1} parent=1 // pred_region
      %s313 = ssub.s32 32, 32
      %314 = vsyncadd [#allocation5], %s313
      %s316 = sshll.u32 [#allocation4], 4
      %s317 = int_to_ptr.vmem [resolvable:$true] %s316
      %319 = dma.vmem_to_hbm [thread:$0]  %s317, 32, %s7, [#allocation5]
    $region49: #{tpu_custom_call.1} parent=1 // pred_fallthru
      _
    // Predicated region
    $region50: #{tpu_custom_call.1} parent=1 // pred_check
      _
    $region51: #{tpu_custom_call.1} parent=1 // pred_check_branch
      %321 = sbr.rel (0) target = $region53
    $region52: #{tpu_custom_call.1} parent=1 // pred_region
      %322 = dma.done [#allocation5], 32
    $region53: #{tpu_custom_call.1} parent=1 // pred_fallthru
      _
    %323 = vsyncpa [#allocation5], 1

</llo_original>
